<compile_context>
chip_gen: v7x
topology: tpu7x:2x2x1
jax: 0.10.0
libtpu: 0.0.40
codegen_flags: <defaults>
</compile_context>

<pallas_src>
import jax
import jax.numpy as jnp
from jax.experimental import pallas as pl
from jax.experimental.pallas import tpu as pltpu


# ---------------------------------------------------------------------------
# Kernel body (shared by all paths):  out = scale * (x + loc)
# Per-channel params broadcast as cheap vreg splats.
# ---------------------------------------------------------------------------
def _actnorm_kernel(x_ref, loc_ref, scale_ref, o_ref):
    o_ref[...] = (scale_ref[...] * (x_ref[...] + loc_ref[...])).astype(o_ref.dtype)


def _sublane_unit(dtype):
    """Packed-sublane alignment: 8 for f32, 16 for bf16, 32 for int8/fp8."""
    return max(8, 32 // jnp.dtype(dtype).itemsize)


def _chip_plan():
    """(per-block byte budget, explicit vmem_limit_bytes) for this TPU gen."""
    try:
        vmem = pltpu.get_tpu_info().vmem_capacity_bytes
    except Exception:
        vmem = None
    if vmem is not None and vmem > (64 << 20):
        # v5e / v6e: 128 MiB physical VMEM.  8 MiB x-block + 8 MiB out-block,
        # double-buffered (~32 MiB) fits comfortably under a 64 MiB limit.
        return 8 << 20, 64 << 20
    # v7x-class (64 MiB physical) or unknown chip: stay conservative.
    # 4 MiB blocks -> (x + out) * 2 buffers ~ 16 MiB under a 28 MiB limit.
    return 4 << 20, 28 << 20


def actnorm_forward(x, loc, scale, *, logdet=False, block_budget_bytes=None):
    """ActNorm.forward(input) with training/init disabled (initialized==1).

    x:     (N, C, H, W) or (N, C)
    loc:   (1, C, 1, 1)
    scale: (1, C, 1, 1)
    block_budget_bytes: testing override for the per-block byte budget.
    """
    if x.ndim not in (2, 4):
        raise ValueError(f"ActNorm expects 2-D or 4-D input, got ndim={x.ndim}")

    dtype = x.dtype
    itemsize = jnp.dtype(dtype).itemsize
    sub = _sublane_unit(dtype)
    budget_bytes, vmem_limit = _chip_plan()
    if block_budget_bytes is not None:
        budget_bytes = int(block_budget_bytes)
    budget_elems = max(sub * 128, budget_bytes // itemsize)

    # Params are pre-cast to the input dtype; compute stays in that dtype
    # (bf16 VALU is native on v6e/v7x; the compiler handles v5e).
    loc_c = loc.astype(dtype)
    scale_c = scale.astype(dtype)

    compiler_kw = dict(vmem_limit_bytes=vmem_limit)

    if x.ndim == 2:
        # ----- lane-dense 2-D path: channels on the lane axis ---------------
        n, c = x.shape
        h = w = 1
        loc_p = loc_c.reshape(1, c)
        scale_p = scale_c.reshape(1, c)

        if c * sub <= budget_elems:
            tc = c
        else:
            tc = min(c, max(128, ((budget_elems // sub) // 128) * 128))
        rows = max(sub, budget_elems // tc)
        tn = min(n, max(sub, (rows // sub) * sub))
        grid = (pl.cdiv(n, tn), pl.cdiv(c, tc))

        out = pl.pallas_call(
            _actnorm_kernel,
            out_shape=jax.ShapeDtypeStruct((n, c), dtype),
            grid_spec=pltpu.PrefetchScalarGridSpec(
                num_scalar_prefetch=0,
                grid=grid,
                in_specs=[
                    pl.BlockSpec((tn, tc), lambda i, j: (i, j)),
                    pl.BlockSpec((1, tc), lambda i, j: (0, j)),
                    pl.BlockSpec((1, tc), lambda i, j: (0, j)),
                ],
                out_specs=pl.BlockSpec((tn, tc), lambda i, j: (i, j)),
            ),
            compiler_params=pltpu.CompilerParams(
                dimension_semantics=("parallel", "parallel"), **compiler_kw),
            cost_estimate=pl.CostEstimate(
                flops=2 * n * c, transcendentals=0,
                bytes_accessed=2 * n * c * itemsize),
        )(x, loc_p, scale_p)

    else:
        # ----- lane-dense 4-D path: flatten spatial onto the lane axis ------
        n, c, h, w = x.shape
        hw = h * w
        x3 = x.reshape(n, c, hw)
        loc_p = loc_c.reshape(1, c, 1)
        scale_p = scale_c.reshape(1, c, 1)
        per_image = c * hw

        if per_image <= budget_elems:
            # -- Batch-folded path: block = (tb, C, HW), 1-D parallel grid. --
            tb = min(n, max(1, budget_elems // per_image))
            nblocks = pl.cdiv(n, tb)
            if n >= 2:
                # >=2 grid steps so v7x megacore has something to split and
                # the pipeline gets at least one overlap step.
                nblocks = max(nblocks, 2)
            tb = pl.cdiv(n, nblocks)  # balanced block size
            grid = (pl.cdiv(n, tb),)

            out = pl.pallas_call(
                _actnorm_kernel,
                out_shape=jax.ShapeDtypeStruct((n, c, hw), dtype),
                grid_spec=pltpu.PrefetchScalarGridSpec(
                    num_scalar_prefetch=0,
                    grid=grid,
                    in_specs=[
                        pl.BlockSpec((tb, c, hw), lambda i: (i, 0, 0)),
                        pl.BlockSpec((1, c, 1), lambda i: (0, 0, 0)),
                        pl.BlockSpec((1, c, 1), lambda i: (0, 0, 0)),
                    ],
                    out_specs=pl.BlockSpec((tb, c, hw), lambda i: (i, 0, 0)),
                ),
                compiler_params=pltpu.CompilerParams(
                    dimension_semantics=("parallel",), **compiler_kw),
                cost_estimate=pl.CostEstimate(
                    flops=2 * n * per_image, transcendentals=0,
                    bytes_accessed=2 * n * per_image * itemsize),
            )(x3, loc_p, scale_p)

        else:
            # -- One image exceeds the budget: tile channels, and only if
            #    still needed the flattened spatial axis.  Flat 1-D parallel
            #    grid (divmod index maps) keeps megacore sharding even. ------
            if hw * sub <= budget_elems:
                tl = hw                           # full-HW lane tile
            else:
                tl = min(hw, max(128, ((budget_elems // sub) // 128) * 128))
            rows = max(sub, budget_elems // tl)
            tc = min(c, max(sub, (rows // sub) * sub))

            n_cb = pl.cdiv(c, tc)
            n_sb = pl.cdiv(hw, tl)
            blocks_per_img = n_cb * n_sb
            grid = (n * blocks_per_img,)

            def x_map(i):
                b = i // blocks_per_img
                r = i % blocks_per_img
                return (b, r // n_sb, r % n_sb)

            def p_map(i):
                r = i % blocks_per_img
                return (0, r // n_sb, 0)

            out = pl.pallas_call(
                _actnorm_kernel,
                out_shape=jax.ShapeDtypeStruct((n, c, hw), dtype),
                grid_spec=pltpu.PrefetchScalarGridSpec(
                    num_scalar_prefetch=0,
                    grid=grid,
                    in_specs=[
                        pl.BlockSpec((1, tc, tl), x_map),
                        pl.BlockSpec((1, tc, 1), p_map),
                        pl.BlockSpec((1, tc, 1), p_map),
                    ],
                    out_specs=pl.BlockSpec((1, tc, tl), x_map),
                ),
                compiler_params=pltpu.CompilerParams(
                    dimension_semantics=("parallel",), **compiler_kw),
                cost_estimate=pl.CostEstimate(
                    flops=2 * n * per_image, transcendentals=0,
                    bytes_accessed=2 * n * per_image * itemsize),
            )(x3, loc_p, scale_p)

        out = out.reshape(n, c, h, w)

    if logdet:
        # Parameter-only reduction (no dependence on x) -> plain JAX glue.
        # Kept in f32 (scale's parameter precision) per review.
        ld_val = (h * w) * jnp.sum(jnp.log(jnp.abs(scale.astype(jnp.float32))))
        ld = jnp.full((x.shape[0],), ld_val, dtype=jnp.float32)
        return out, ld
    return out


# ---------------------------------------------------------------------------
# Pure-JAX reference (mirrors the PyTorch forward; logdet in f32)
# ---------------------------------------------------------------------------
def _reference(x, loc, scale, *, logdet=False):
    squeeze = False
    if x.ndim == 2:
        x = x[:, :, None, None]
        squeeze = True
    n, _, h, w = x.shape
    out = (scale.astype(x.dtype) * (x + loc.astype(x.dtype))).astype(x.dtype)
    if squeeze:
        out = out[:, :, 0, 0]
    if logdet:
        ld = (h * w) * jnp.sum(jnp.log(jnp.abs(scale.astype(jnp.float32))))
        ld = jnp.full((n,), ld, dtype=jnp.float32)
        return out, ld
    return out


if __name__ == "__main__":
    key = jax.random.PRNGKey(0)
    k_x, k_loc, k_scale, k_x2, k_x3, k_x4 = jax.random.split(key, 6)

    N, C, H, W = 2, 4, 16, 16

    x = jax.random.normal(k_x, (N, C, H, W), dtype=jnp.float32)
    # Deterministic, non-trivial parameters (module __init__ gives zeros/ones;
    # perturb so the test is meaningful).
    loc = 0.1 * jax.random.normal(k_loc, (1, C, 1, 1), dtype=jnp.float32)
    scale = 1.0 + 0.1 * jax.random.normal(k_scale, (1, C, 1, 1), dtype=jnp.float32)

    # 1) 4-D path with logdet (batch-folded block path).
    out, ld = actnorm_forward(x, loc, scale, logdet=True)
    jax.block_until_ready((out, ld))
    ref_out, ref_ld = _reference(x, loc, scale, logdet=True)
    assert out.shape == (N, C, H, W)
    assert ld.shape == (N,)
    assert jnp.allclose(out, ref_out, atol=1e-6, rtol=1e-6)
    assert jnp.allclose(ld, ref_ld, atol=1e-6, rtol=1e-6)

    # 2) 2-D path (squeeze branch), no logdet — lane-dense (N, C) kernel.
    x2d = jax.random.normal(k_x2, (N, C), dtype=jnp.float32)
    out2d = actnorm_forward(x2d, loc, scale, logdet=False)
    jax.block_until_ready(out2d)
    ref2d = _reference(x2d, loc, scale, logdet=False)
    assert out2d.shape == (N, C)
    assert jnp.allclose(out2d, ref2d, atol=1e-6, rtol=1e-6)

    # 3) 4-D path with H*W not a multiple of 128 (H*W = 100): full-dim lane
    #    block via batch folding, still correct.
    Ci, Hi, Wi = 8, 10, 10
    x_irr = jax.random.normal(k_x3, (N, Ci, Hi, Wi), dtype=jnp.float32)
    loc_i = 0.1 * jax.random.normal(k_loc, (1, Ci, 1, 1), dtype=jnp.float32)
    scale_i = 1.0 + 0.1 * jax.random.normal(k_scale, (1, Ci, 1, 1), dtype=jnp.float32)
    out_irr = actnorm_forward(x_irr, loc_i, scale_i, logdet=False)
    jax.block_until_ready(out_irr)
    ref_irr = _reference(x_irr, loc_i, scale_i, logdet=False)
    assert jnp.allclose(out_irr, ref_irr, atol=1e-6, rtol=1e-6)

    # 4) Force the channel/spatial-tiled fallback (flat 1-D grid with divmod
    #    index maps) by shrinking the per-block budget.
    Ct, Ht, Wt = 16, 32, 32
    x_big = jax.random.normal(k_x4, (N, Ct, Ht, Wt), dtype=jnp.float32)
    loc_t = 0.1 * jax.random.normal(k_loc, (1, Ct, 1, 1), dtype=jnp.float32)
    scale_t = 1.0 + 0.1 * jax.random.normal(k_scale, (1, Ct, 1, 1), dtype=jnp.float32)
    out_big = actnorm_forward(x_big, loc_t, scale_t, logdet=False,
                              block_budget_bytes=16 * 1024)
    jax.block_until_ready(out_big)
    ref_big = _reference(x_big, loc_t, scale_t, logdet=False)
    assert jnp.allclose(out_big, ref_big, atol=1e-6, rtol=1e-6)

    # 5) bf16 input (dtype-aware sublane unit, native-dtype compute).
    x_bf = x.astype(jnp.bfloat16)
    out_bf = actnorm_forward(x_bf, loc, scale, logdet=False)
    jax.block_until_ready(out_bf)
    ref_bf = _reference(x_bf, loc, scale, logdet=False)
    assert out_bf.dtype == jnp.bfloat16
    assert jnp.allclose(out_bf.astype(jnp.float32), ref_bf.astype(jnp.float32),
                        atol=5e-2, rtol=5e-2)

    # TODO(synk): data-dependent initialize()/initialized buffer (training-time
    # first-batch stats) and the reverse() path are stateful module logic, not
    # part of the eval forward hot path; intentionally not implemented here.

    print("KERNEL_OK")
</pallas_src>

<mosaic_0001>
module attributes {stable_mosaic.version = 11 : i64} {
  func.func @_actnorm_kernel(%arg0: i32, %arg1: memref<1x4x256xf32, #tpu.memory_space<vmem>>, %arg2: memref<1x4x1xf32, #tpu.memory_space<vmem>>, %arg3: memref<1x4x1xf32, #tpu.memory_space<vmem>>, %arg4: memref<1x4x256xf32, #tpu.memory_space<vmem>>) attributes {dimension_semantics = [#tpu.dimension_semantics<parallel>], iteration_bounds = array<i64: 2>, scalar_prefetch = 0 : i64, scratch_operands = 0 : i64, tpu.core_type = #tpu.core_type<tc>, window_params = [{transform_indices = @transform_0, window_bounds = array<i64: 1, 4, 256>}, {pipeline_mode = #tpu.pipeline_mode<synchronous>, transform_indices = @transform_1, window_bounds = array<i64: 1, 4, 1>}, {pipeline_mode = #tpu.pipeline_mode<synchronous>, transform_indices = @transform_2, window_bounds = array<i64: 1, 4, 1>}, {transform_indices = @transform_3, window_bounds = array<i64: 1, 4, 256>}]} {
    %c0 = arith.constant 0 : index
    %c0_0 = arith.constant 0 : index
    %c0_1 = arith.constant 0 : index
    %0 = vector.load %arg3[%c0, %c0_0, %c0_1] : memref<1x4x1xf32, #tpu.memory_space<vmem>>, vector<1x4x1xf32>
    %c0_2 = arith.constant 0 : index
    %c0_3 = arith.constant 0 : index
    %c0_4 = arith.constant 0 : index
    %1 = vector.load %arg1[%c0_2, %c0_3, %c0_4] : memref<1x4x256xf32, #tpu.memory_space<vmem>>, vector<1x4x256xf32>
    %c0_5 = arith.constant 0 : index
    %c0_6 = arith.constant 0 : index
    %c0_7 = arith.constant 0 : index
    %2 = vector.load %arg2[%c0_5, %c0_6, %c0_7] : memref<1x4x1xf32, #tpu.memory_space<vmem>>, vector<1x4x1xf32>
    %3 = vector.broadcast %2 : vector<1x4x1xf32> to vector<1x4x256xf32>
    %4 = arith.addf %1, %3 : vector<1x4x256xf32>
    %5 = vector.broadcast %0 : vector<1x4x1xf32> to vector<1x4x256xf32>
    %6 = arith.mulf %5, %4 : vector<1x4x256xf32>
    %c0_8 = arith.constant 0 : index
    %c0_9 = arith.constant 0 : index
    %c0_10 = arith.constant 0 : index
    %7 = vector.load %arg4[%c0_8, %c0_9, %c0_10] : memref<1x4x256xf32, #tpu.memory_space<vmem>>, vector<1x4x256xf32>
    tpu.vector_store %arg4[%c0_8, %c0_9, %c0_10], %6 {strides = array<i32>} : memref<1x4x256xf32, #tpu.memory_space<vmem>>, vector<1x4x256xf32>,
    return
  }
  func.func @transform_0(%arg0: i32) -> (i32, i32, i32) {
    %c0_i32 = arith.constant 0 : i32
    %c0_i32_0 = arith.constant 0 : i32
    %c0_i32_1 = arith.constant 0 : i32
    return %arg0, %c0_i32, %c0_i32_0 : i32, i32, i32
  }
  func.func @transform_1(%arg0: i32) -> (i32, i32, i32) {
    %c0_i32 = arith.constant 0 : i32
    %c0_i32_0 = arith.constant 0 : i32
    %c0_i32_1 = arith.constant 0 : i32
    %c0_i32_2 = arith.constant 0 : i32
    return %c0_i32, %c0_i32_0, %c0_i32_1 : i32, i32, i32
  }
  func.func @transform_2(%arg0: i32) -> (i32, i32, i32) {
    %c0_i32 = arith.constant 0 : i32
    %c0_i32_0 = arith.constant 0 : i32
    %c0_i32_1 = arith.constant 0 : i32
    %c0_i32_2 = arith.constant 0 : i32
    return %c0_i32, %c0_i32_0, %c0_i32_1 : i32, i32, i32
  }
  func.func @transform_3(%arg0: i32) -> (i32, i32, i32) {
    %c0_i32 = arith.constant 0 : i32
    %c0_i32_0 = arith.constant 0 : i32
    %c0_i32_1 = arith.constant 0 : i32
    return %arg0, %c0_i32, %c0_i32_0 : i32, i32, i32
  }
}

</mosaic_0001>

<llo_original>
// kernel: tpu_custom_call.1
$region0: #{tpu_custom_call.1}
  #allocation0 [shape = 'u32[]', space=smem, size = 0x4, offset = 0x4, fixed_abs, tag = 'smem constant byte address 0x4 - core index']
  #allocation1 [shape = 'u32[144,128]{1,0:T(1,128)}', space=vmem, size = 0x12000, scoped, tag = 'internal scratch']
  %s0 = inlined_call_operand.hbm [shape: f32[2,4,256], index: 0, kind: input, shape index: {}]
  %s1 = inlined_call_operand.vmem [shape: f32[1,4,1], index: 1, kind: input, shape index: {}]
  %s2 = inlined_call_operand.vmem [shape: f32[1,4,1], index: 2, kind: input, shape index: {}]
  %s3 = inlined_call_operand.hbm [shape: f32[2,4,256], index: 3, kind: output, shape index: {}]
  %s4 = sld [smem:[#allocation0]]
  $region49: #{tpu_custom_call.1} parent=0
    _
  %s6 = ssub.s32 1, %s4
  %s7 = scalar_select 0, %s6, %s4
  $region1: #{tpu_custom_call.1} parent=0
    #allocation2 [shape = 'u8[8192]{0}', space=vmem, size = 0x2000, scoped, tag = 'input window, operand 0']
    #allocation3 [shape = 's32[2]{0}', space=sflag, size = 0x8, scoped, tag = 'scoped memory for tpu_custom_call.1']
    #allocation4 [shape = 's32[2]{0}', space=sflag, size = 0x8, scoped, tag = 'scoped memory for tpu_custom_call.1']
    #allocation5 [shape = 'u8[8192]{0}', space=vmem, size = 0x2000, scoped, tag = 'output window, operand 0']
    %8 = vsyncpa [#allocation3], 0
    %s9 = scalar_lea.sflag [#allocation3], 1
    %10 = vsyncpa %s9, 0
    %11 = vsyncpa [#allocation4], 0
    %s12 = scalar_lea.sflag [#allocation4], 1
    %13 = vsyncpa %s12, 0
    loop: start=0, step=1, limit=4
    $region2: #{tpu_custom_call.1} parent=1 // loop_pre_header
      _
    $region3: #{tpu_custom_call.1} parent=1 // loop_header
      %s15 = sphi 0, %s19
      %p16 = scmp.ge.s32.totalorder %s15, 4
      %s25 = sphi 0, %s27
      %s28 = sphi 0, %s25
      %s29 = sphi 0, %s28
      %s45 = sphi 0, %s29
      %s49 = sphi 0, %s49
      %s51 = sphi 0, %s49
      %s52 = sphi 0, %s51
      %s66 = sphi 0, %s52
      %s70 = sphi 0, %s70
      %s72 = sphi 0, %s70
      %s73 = sphi 0, %s72
      %s87 = sphi 0, %s73
      %s93 = sphi 0, %s95
      %s96 = sphi 0, %s93
      %s97 = sphi 0, %s96
      %s113 = sphi 0, %s97
    $region4: #{tpu_custom_call.1} parent=1 // loop_header_branch
      %18 = sbr.rel (%p16) target = $region8
    $region5: #{tpu_custom_call.1} parent=1 // loop_body
      %s20 = ssub.s32 %s15, 1
      %s21 = ssub.s32 %s15, 2
      %s22 = sadd.s32 %s15, 1
      %s23 = ssub.s32 %s15, %s22
      %p24 = scmp.eq.s32.totalorder %s23, 0
      %s26 = sadd.s32 %s25, 1
      %s27 = scalar_select %p24, %s25, %s26
      %p30 = pneg %p24
      %p31 = scmp.eq.s32.totalorder %s15, 1
      %p32 = por %p30, %p31
      %p33 = scmp.ne.s32.totalorder %s25, %s28
      %p34 = scmp.eq.s32.totalorder %s15, 0
      %p35 = por %p33, %p34
      %p36 = scmp.ne.s32.totalorder %s25, %s28
      %p37 = scmp.eq.s32.totalorder %s20, 1
      %p38 = por %p36, %p37
      %p39 = scmp.ne.s32.totalorder %s28, %s29
      %p40 = scmp.eq.s32.totalorder %s20, 0
      %p41 = por %p39, %p40
      %p42 = scmp.ne.s32.totalorder %s28, %s29
      %p43 = scmp.eq.s32.totalorder %s21, 1
      %p44 = por %p42, %p43
      %p46 = scmp.ne.s32.totalorder %s29, %s45
      %p47 = scmp.eq.s32.totalorder %s21, 0
      %p48 = por %p46, %p47
      %s50 = sadd.s32 %s49, 1
      %p53 = scmp.eq.s32.totalorder %s15, 1
      %p54 = scmp.ne.s32.totalorder %s49, %s51
      %p55 = scmp.eq.s32.totalorder %s15, 0
      %p56 = por %p54, %p55
      %p57 = scmp.ne.s32.totalorder %s49, %s51
      %p58 = scmp.eq.s32.totalorder %s20, 1
      %p59 = por %p57, %p58
      %p60 = scmp.ne.s32.totalorder %s51, %s52
      %p61 = scmp.eq.s32.totalorder %s20, 0
      %p62 = por %p60, %p61
      %p63 = scmp.ne.s32.totalorder %s51, %s52
      %p64 = scmp.eq.s32.totalorder %s21, 1
      %p65 = por %p63, %p64
      %p67 = scmp.ne.s32.totalorder %s52, %s66
      %p68 = scmp.eq.s32.totalorder %s21, 0
      %p69 = por %p67, %p68
      %s71 = sadd.s32 %s70, 1
      %p74 = scmp.eq.s32.totalorder %s15, 1
      %p75 = scmp.ne.s32.totalorder %s70, %s72
      %p76 = scmp.eq.s32.totalorder %s15, 0
      %p77 = por %p75, %p76
      %p78 = scmp.ne.s32.totalorder %s70, %s72
      %p79 = scmp.eq.s32.totalorder %s20, 1
      %p80 = por %p78, %p79
      %p81 = scmp.ne.s32.totalorder %s72, %s73
      %p82 = scmp.eq.s32.totalorder %s20, 0
      %p83 = por %p81, %p82
      %p84 = scmp.ne.s32.totalorder %s72, %s73
      %p85 = scmp.eq.s32.totalorder %s21, 1
      %p86 = por %p84, %p85
      %p88 = scmp.ne.s32.totalorder %s73, %s87
      %p89 = scmp.eq.s32.totalorder %s21, 0
      %p90 = por %p88, %p89
      %s91 = ssub.s32 %s15, %s22
      %p92 = scmp.eq.s32.totalorder %s91, 0
      %s94 = sadd.s32 %s93, 1
      %s95 = scalar_select %p92, %s93, %s94
      %p98 = pneg %p92
      %p99 = scmp.eq.s32.totalorder %s15, 1
      %p100 = por %p98, %p99
      %p101 = scmp.ne.s32.totalorder %s93, %s96
      %p102 = scmp.eq.s32.totalorder %s15, 0
      %p103 = por %p101, %p102
      %p104 = scmp.ne.s32.totalorder %s93, %s96
      %p105 = scmp.eq.s32.totalorder %s20, 1
      %p106 = por %p104, %p105
      %p107 = scmp.ne.s32.totalorder %s96, %s97
      %p108 = scmp.eq.s32.totalorder %s20, 0
      %p109 = por %p107, %p108
      %p110 = scmp.ne.s32.totalorder %s96, %s97
      %p111 = scmp.eq.s32.totalorder %s21, 1
      %p112 = por %p110, %p111
      %p114 = scmp.ne.s32.totalorder %s97, %s113
      %p115 = scmp.eq.s32.totalorder %s21, 0
      %p116 = por %p114, %p115
      %p117 = scmp.le.s32.totalorder 1, %s15
      %p118 = scmp.lt.s32.totalorder %s15, 3
      %p119 = pnand %p117, %p118
      %p120 = pneg %p119
      // Predicated region
      $region9: #{tpu_custom_call.1} parent=5 // pred_check
        _
      $region10: #{tpu_custom_call.1} parent=5 // pred_check_branch
        %122 = sbr.rel (%p119) target = $region12
      $region11: #{tpu_custom_call.1} parent=5 // pred_region
        %s123 = ssub.s32 %s15, 1
        // Predicated region
        $region13: #{tpu_custom_call.1} parent=11 // pred_check
          %p124 = pneg %p62
        $region14: #{tpu_custom_call.1} parent=11 // pred_check_branch
          %126 = sbr.rel (%p124) target = $region16
        $region15: #{tpu_custom_call.1} parent=11 // pred_region
          _
        $region16: #{tpu_custom_call.1} parent=11 // pred_fallthru
          _
        // Predicated region
        $region17: #{tpu_custom_call.1} parent=11 // pred_check
          %p127 = pneg %p83
        $region18: #{tpu_custom_call.1} parent=11 // pred_check_branch
          %129 = sbr.rel (%p127) target = $region20
        $region19: #{tpu_custom_call.1} parent=11 // pred_region
          _
        $region20: #{tpu_custom_call.1} parent=11 // pred_fallthru
          _
      $region12: #{tpu_custom_call.1} parent=5 // pred_fallthru
        _
      %p130 = scmp.lt.s32.totalorder %s15, 2
      // Predicated region
      $region21: #{tpu_custom_call.1} parent=5 // pred_check
        %p131 = pneg %p130
      $region22: #{tpu_custom_call.1} parent=5 // pred_check_branch
        %133 = sbr.rel (%p131) target = $region24
      $region23: #{tpu_custom_call.1} parent=5 // pred_region
        // Predicated region
        $region25: #{tpu_custom_call.1} parent=23 // pred_check
          %p134 = pneg %p35
        $region26: #{tpu_custom_call.1} parent=23 // pred_check_branch
          %136 = sbr.rel (%p134) target = $region28
        $region27: #{tpu_custom_call.1} parent=23 // pred_region
          %s137 = sand.u32 %s25, 1
          %s138 = scalar_lea.sflag [#allocation3], %s137
          %s139 = sand.u32 %s25, 1
          %s140 = smul.addr %s139, 8
          %s141 = scalar_lea.vmem [#allocation2], %s140
          %s143 = ssub.s32 128, 128
          %144 = vsyncadd %s138, %s143
          %s145 = smul.addr %s15, 2
          %s146 = smul.addr %s145, 64
          %s147 = scalar_lea.hbm %s0, %s146
          %s149 = sshll.u32 %s141, 4
          %s150 = int_to_ptr.vmem [resolvable:$true] %s149
          %152 = dma.hbm_to_vmem [thread:$0]  %s147, 128, %s150, %s138
        $region28: #{tpu_custom_call.1} parent=23 // pred_fallthru
          _
      $region24: #{tpu_custom_call.1} parent=5 // pred_fallthru
        _
      %p153 = scmp.le.s32.totalorder 1, %s15
      %p154 = scmp.lt.s32.totalorder %s15, 3
      %p155 = pnand %p153, %p154
      %p156 = pneg %p155
      // Predicated region
      $region29: #{tpu_custom_call.1} parent=5 // pred_check
        _
      $region30: #{tpu_custom_call.1} parent=5 // pred_check_branch
        %158 = sbr.rel (%p155) target = $region32
      $region31: #{tpu_custom_call.1} parent=5 // pred_region
        %s159 = ssub.s32 %s15, 1
        %s160 = sand.u32 %s28, 1
        %s161 = scalar_lea.sflag [#allocation3], %s160
        %s162 = sand.u32 %s28, 1
        %s163 = smul.addr %s162, 8
        %s164 = scalar_lea.vmem [#allocation2], %s163
        // Predicated region
        $region33: #{tpu_custom_call.1} parent=31 // pred_check
          %p165 = pneg %p41
        $region34: #{tpu_custom_call.1} parent=31 // pred_check_branch
          %167 = sbr.rel (%p165) target = $region36
        $region35: #{tpu_custom_call.1} parent=31 // pred_region
          %168 = dma.done %s161, 128
        $region36: #{tpu_custom_call.1} parent=31 // pred_fallthru
          _
        %s169 = sand.u32 %s28, 1
        %s170 = scalar_lea.sflag [#allocation3], %s169
        %s171 = sand.u32 %s28, 1
        %s172 = smul.addr %s171, 8
        %s173 = scalar_lea.vmem [#allocation2], %s172
        %p174 = pneg %p41
        %p175 = pneg %p38
        %p176 = pneg %p62
        %p177 = pneg %p59
        %p178 = pneg %p83
        %p179 = pneg %p80
        %p180 = pneg %p109
        %p181 = pneg %p106
        %s182 = sand.u32 %s96, 1
        %s183 = scalar_lea.sflag [#allocation4], %s182
        %s184 = sand.u32 %s96, 1
        %s185 = smul.addr %s184, 8
        %s186 = scalar_lea.vmem [#allocation5], %s185
        %v187 = vld [vmem:[%s2] sm:$0xf]
        %v188 = vld [vmem:[%s164] sm:$0xff]
        %v189 = vld [vmem:[%s1] sm:$0xf]
        %191 = vset.pattern.permute.xlu0 0
        %192 = vperm.xlu0 %191, %v189
        %v193 = vpop.permute.xlu0 %192
        %v195 = vunpack.c.l.s4 839922192
        %v196 = vunpack.c.0.s8 %v195
        %v197 = vlaneseq
        %v198 = vshrl.u32 %v197, 7
        %v199 = vsub.s32 %v196, %v198
        %v200 = vrot.slane %v193, %v199
        %v202 = vadd.f32 %v188, %v200
        %204 = vset.pattern.permute.xlu0 0
        %205 = vperm.xlu0 %204, %v187
        %v206 = vpop.permute.xlu0 %205
        %v209 = vcombine.high %v202, %v202
        %v211 = vmul.f32 %v206, %v202
        %v212 = vmul.f32 %v206, %v209
        %v215 = vcombine.low %v211, %v212
        %217 = vst [vmem:[%s186] sm:$0xff] %v215
        %s218 = sand.u32 %s96, 1
        %s219 = scalar_lea.sflag [#allocation4], %s218
        %s220 = sand.u32 %s96, 1
        %s221 = smul.addr %s220, 8
        %s222 = scalar_lea.vmem [#allocation5], %s221
        // Predicated region
        $region37: #{tpu_custom_call.1} parent=31 // pred_check
          %p223 = pneg %p106
        $region38: #{tpu_custom_call.1} parent=31 // pred_check_branch
          %225 = sbr.rel (%p223) target = $region40
        $region39: #{tpu_custom_call.1} parent=31 // pred_region
          %s227 = ssub.s32 128, 128
          %228 = vsyncadd %s219, %s227
          %s229 = smul.addr %s20, 2
          %s230 = smul.addr %s229, 64
          %s231 = scalar_lea.hbm %s3, %s230
          %s233 = sshll.u32 %s222, 4
          %s234 = int_to_ptr.vmem [resolvable:$true] %s233
          %236 = dma.vmem_to_hbm [thread:$0]  %s234, 128, %s231, %s219
        $region40: #{tpu_custom_call.1} parent=31 // pred_fallthru
          _
      $region32: #{tpu_custom_call.1} parent=5 // pred_fallthru
        _
      %p237 = scmp.le.s32.totalorder 2, %s15
      // Predicated region
      $region41: #{tpu_custom_call.1} parent=5 // pred_check
        %p238 = pneg %p237
      $region42: #{tpu_custom_call.1} parent=5 // pred_check_branch
        %240 = sbr.rel (%p238) target = $region44
      $region43: #{tpu_custom_call.1} parent=5 // pred_region
        %s241 = ssub.s32 %s15, 2
        // Predicated region
        $region45: #{tpu_custom_call.1} parent=43 // pred_check
          %p242 = pneg %p112
        $region46: #{tpu_custom_call.1} parent=43 // pred_check_branch
          %244 = sbr.rel (%p242) target = $region48
        $region47: #{tpu_custom_call.1} parent=43 // pred_region
          %s245 = sand.u32 %s97, 1
          %s246 = scalar_lea.sflag [#allocation4], %s245
          %s247 = sand.u32 %s97, 1
          %s248 = smul.addr %s247, 8
          %s249 = scalar_lea.vmem [#allocation5], %s248
          %250 = dma.done %s246, 128
        $region48: #{tpu_custom_call.1} parent=43 // pred_fallthru
          _
      $region44: #{tpu_custom_call.1} parent=5 // pred_fallthru
        _
    $region6: #{tpu_custom_call.1} parent=1 // loop_footer
      %s19 = sadd.s32 1, %s15
    $region7: #{tpu_custom_call.1} parent=1 // loop_footer_branch
      %14 = sbr.rel target = $region3
    $region8: #{tpu_custom_call.1} parent=1 // loop_exit
      _
    %251 = vsyncpa [#allocation3], 1
    %s252 = scalar_lea.sflag [#allocation3], 1
    %253 = vsyncpa %s252, 1
    %254 = vsyncpa [#allocation4], 1
    %s255 = scalar_lea.sflag [#allocation4], 1
    %256 = vsyncpa %s255, 1

</llo_original>
